<compile_context>
chip_gen: v5e
topology: v5e:2x2
jax: 0.10.0
libtpu: 0.0.40
codegen_flags: <defaults>
</compile_context>

<pallas_src>
import jax
import jax.numpy as jnp
from jax.experimental import pallas as pl
from jax.experimental.pallas import tpu as pltpu


def _se_kernel(x_ref, w1t_ref, b1_ref, w2_ref, b2_ref, o_ref):
    # x_ref: (1, C, HW) block for one batch element (native NCHW-flattened layout).
    x = x_ref[0]                                     # (C, HW)
    xf = x.astype(jnp.float32)

    # --- squeeze: global average pool over the spatial (lane) axis ---
    pooled = jnp.mean(xf, axis=1, keepdims=True)     # (C, 1)  cross-lane reduce (XLU)

    # --- excite MLP on the VPU (tiny shapes; keep the MXU out of it) ---
    # h = SiLU(W1 @ pooled + b1)            -> (1, Cr)
    h = jnp.sum(w1t_ref[...] * pooled, axis=0, keepdims=True) + b1_ref[...]
    h = h * jax.nn.sigmoid(h)
    # g = sigmoid(W2 @ h + b2)              -> (C, 1)
    g = jnp.sum(w2_ref[...] * h, axis=1, keepdims=True) + b2_ref[...]
    g = jax.nn.sigmoid(g)

    # --- scale: per-channel scalar broadcast over the lane (HW) axis ---
    o_ref[0] = (xf * g).astype(o_ref.dtype)


def squeeze_excite_pallas(x_nchw, w1, b1, w2, b2):
    """x_nchw: (N, C, H, W); w1: (Cr, C, 1, 1); b1: (Cr,); w2: (C, Cr, 1, 1); b2: (C,)."""
    N, C, H, W = x_nchw.shape
    Cr = w1.shape[0]
    HW = H * W

    # Free reshape (contiguous NCHW -> (N, C, HW)); no relayout / HBM traffic.
    x = x_nchw.reshape(N, C, HW)
    w1t = w1.reshape(Cr, C).T.astype(jnp.float32)    # (C, Cr)
    b1r = b1.reshape(1, Cr).astype(jnp.float32)      # (1, Cr)
    w2r = w2.reshape(C, Cr).astype(jnp.float32)      # (C, Cr)
    b2r = b2.reshape(C, 1).astype(jnp.float32)       # (C, 1)

    # VMEM budget: in + out per-batch blocks, double-buffered, plus weights/slack.
    itemsize = jnp.dtype(x.dtype).itemsize
    block_bytes = C * HW * itemsize
    vmem_limit = int(min(128 * 1024 * 1024,
                         max(16 * 1024 * 1024, 4 * block_bytes + 4 * 1024 * 1024)))
    # TODO(synk): for layers where 4*C*HW*itemsize exceeds ~half of v7x's 64 MiB
    # VMEM, fall back to a two-pass HW-tiled variant (pool pass + scale pass).

    out = pl.pallas_call(
        _se_kernel,
        out_shape=jax.ShapeDtypeStruct((N, C, HW), x.dtype),
        grid_spec=pltpu.PrefetchScalarGridSpec(
            num_scalar_prefetch=0,
            grid=(N,),
            in_specs=[
                pl.BlockSpec((1, C, HW), lambda b: (b, 0, 0)),   # x per batch
                pl.BlockSpec((C, Cr), lambda b: (0, 0)),         # W1^T
                pl.BlockSpec((1, Cr), lambda b: (0, 0)),         # b1
                pl.BlockSpec((C, Cr), lambda b: (0, 0)),         # W2
                pl.BlockSpec((C, 1), lambda b: (0, 0)),          # b2
            ],
            out_specs=pl.BlockSpec((1, C, HW), lambda b: (b, 0, 0)),
        ),
        compiler_params=pltpu.CompilerParams(
            dimension_semantics=("parallel",),
            vmem_limit_bytes=vmem_limit),
    )(x, w1t, b1r, w2r, b2r)

    # Free reshape back to NCHW.
    return out.reshape(N, C, H, W)


def squeeze_excite_ref(x, w1, b1, w2, b2):
    """Pure-JAX reference (NCHW), mirrors the PyTorch module."""
    pooled = jnp.mean(x, axis=(2, 3), keepdims=True)                 # (N, C, 1, 1)
    h = jnp.einsum('ncij,rc->nrij', pooled, w1.reshape(w1.shape[0], -1)) \
        + b1.reshape(1, -1, 1, 1)
    h = h * jax.nn.sigmoid(h)                                        # SiLU
    g = jnp.einsum('nrij,cr->ncij', h, w2.reshape(w2.shape[0], -1)) \
        + b2.reshape(1, -1, 1, 1)
    return x * jax.nn.sigmoid(g)


if __name__ == "__main__":
    key = jax.random.PRNGKey(0)
    N, C, H, W = 2, 8, 16, 16
    se_ratio = 0.25
    Cr = int(C * se_ratio)

    k_x, k_w1, k_b1, k_w2, k_b2 = jax.random.split(key, 5)
    x = jax.random.normal(k_x, (N, C, H, W), dtype=jnp.float32)
    # nn.Conv2d(C, Cr, 1) weights: (Cr, C, 1, 1), bias (Cr,)
    w1 = jax.random.normal(k_w1, (Cr, C, 1, 1), dtype=jnp.float32) * 0.1
    b1 = jax.random.normal(k_b1, (Cr,), dtype=jnp.float32) * 0.1
    # nn.Conv2d(Cr, C, 1) weights: (C, Cr, 1, 1), bias (C,)
    w2 = jax.random.normal(k_w2, (C, Cr, 1, 1), dtype=jnp.float32) * 0.1
    b2 = jax.random.normal(k_b2, (C,), dtype=jnp.float32) * 0.1

    out = squeeze_excite_pallas(x, w1, b1, w2, b2)
    out = jax.block_until_ready(out)

    ref = squeeze_excite_ref(x, w1, b1, w2, b2)
    assert out.shape == x.shape and out.dtype == x.dtype
    assert jnp.allclose(out, ref, atol=1e-5, rtol=1e-5), \
        f"max err {jnp.max(jnp.abs(out - ref))}"

    print("KERNEL_OK")
</pallas_src>

<mosaic_0001>
module attributes {stable_mosaic.version = 11 : i64} {
  func.func @_se_kernel(%arg0: i32, %arg1: memref<1x8x256xf32, #tpu.memory_space<vmem>>, %arg2: memref<8x2xf32, #tpu.memory_space<vmem>>, %arg3: memref<1x2xf32, #tpu.memory_space<vmem>>, %arg4: memref<8x2xf32, #tpu.memory_space<vmem>>, %arg5: memref<8x1xf32, #tpu.memory_space<vmem>>, %arg6: memref<1x8x256xf32, #tpu.memory_space<vmem>>) attributes {dimension_semantics = [#tpu.dimension_semantics<parallel>], iteration_bounds = array<i64: 2>, scalar_prefetch = 0 : i64, scratch_operands = 0 : i64, tpu.core_type = #tpu.core_type<tc>, window_params = [{transform_indices = @transform_0, window_bounds = array<i64: 1, 8, 256>}, {pipeline_mode = #tpu.pipeline_mode<synchronous>, transform_indices = @transform_1, window_bounds = array<i64: 8, 2>}, {pipeline_mode = #tpu.pipeline_mode<synchronous>, transform_indices = @transform_2, window_bounds = array<i64: 1, 2>}, {pipeline_mode = #tpu.pipeline_mode<synchronous>, transform_indices = @transform_3, window_bounds = array<i64: 8, 2>}, {pipeline_mode = #tpu.pipeline_mode<synchronous>, transform_indices = @transform_4, window_bounds = array<i64: 8, 1>}, {transform_indices = @transform_5, window_bounds = array<i64: 1, 8, 256>}]} {
    %c0 = arith.constant 0 : index
    %c0_0 = arith.constant 0 : index
    %c0_1 = arith.constant 0 : index
    %0 = vector.load %arg1[%c0, %c0_0, %c0_1] : memref<1x8x256xf32, #tpu.memory_space<vmem>>, vector<1x8x256xf32>
    %1 = vector.shape_cast %0 : vector<1x8x256xf32> to vector<8x256xf32>
    %cst = arith.constant dense<0.000000e+00> : vector<8xf32>
    %2 = vector.multi_reduction <add>, %1, %cst [1] : vector<8x256xf32> to vector<8xf32>
    %3 = vector.shape_cast %2 : vector<8xf32> to vector<8x1xf32>
    %cst_2 = arith.constant 2.560000e+02 : f32
    %4 = vector.broadcast %cst_2 : f32 to vector<8x1xf32>
    %5 = arith.divf %3, %4 : vector<8x1xf32>
    %c0_3 = arith.constant 0 : index
    %c0_4 = arith.constant 0 : index
    %6 = vector.load %arg2[%c0_3, %c0_4] : memref<8x2xf32, #tpu.memory_space<vmem>>, vector<8x2xf32>
    %7 = vector.broadcast %5 : vector<8x1xf32> to vector<8x2xf32>
    %8 = arith.mulf %6, %7 : vector<8x2xf32>
    %cst_5 = arith.constant dense<0.000000e+00> : vector<2xf32>
    %9 = vector.multi_reduction <add>, %8, %cst_5 [0] : vector<8x2xf32> to vector<2xf32>
    %10 = vector.shape_cast %9 : vector<2xf32> to vector<1x2xf32>
    %c0_6 = arith.constant 0 : index
    %c0_7 = arith.constant 0 : index
    %11 = vector.load %arg3[%c0_6, %c0_7] : memref<1x2xf32, #tpu.memory_space<vmem>>, vector<1x2xf32>
    %12 = arith.addf %10, %11 : vector<1x2xf32>
    %13 = arith.negf %12 : vector<1x2xf32>
    %14 = math.exp %13 : vector<1x2xf32>
    %cst_8 = arith.constant 1.000000e+00 : f32
    %15 = vector.broadcast %cst_8 : f32 to vector<1x2xf32>
    %16 = arith.addf %15, %14 : vector<1x2xf32>
    %17 = arith.divf %15, %16 : vector<1x2xf32>
    %18 = arith.mulf %12, %17 : vector<1x2xf32>
    %c0_9 = arith.constant 0 : index
    %c0_10 = arith.constant 0 : index
    %19 = vector.load %arg4[%c0_9, %c0_10] : memref<8x2xf32, #tpu.memory_space<vmem>>, vector<8x2xf32>
    %20 = vector.broadcast %18 : vector<1x2xf32> to vector<8x2xf32>
    %21 = arith.mulf %19, %20 : vector<8x2xf32>
    %cst_11 = arith.constant dense<0.000000e+00> : vector<8xf32>
    %22 = vector.multi_reduction <add>, %21, %cst_11 [1] : vector<8x2xf32> to vector<8xf32>
    %23 = vector.shape_cast %22 : vector<8xf32> to vector<8x1xf32>
    %c0_12 = arith.constant 0 : index
    %c0_13 = arith.constant 0 : index
    %24 = vector.load %arg5[%c0_12, %c0_13] : memref<8x1xf32, #tpu.memory_space<vmem>>, vector<8x1xf32>
    %25 = arith.addf %23, %24 : vector<8x1xf32>
    %26 = arith.negf %25 : vector<8x1xf32>
    %27 = math.exp %26 : vector<8x1xf32>
    %cst_14 = arith.constant 1.000000e+00 : f32
    %28 = vector.broadcast %cst_14 : f32 to vector<8x1xf32>
    %29 = arith.addf %28, %27 : vector<8x1xf32>
    %30 = arith.divf %28, %29 : vector<8x1xf32>
    %31 = vector.broadcast %30 : vector<8x1xf32> to vector<8x256xf32>
    %32 = arith.mulf %1, %31 : vector<8x256xf32>
    %c0_15 = arith.constant 0 : index
    %c0_16 = arith.constant 0 : index
    %c0_17 = arith.constant 0 : index
    %33 = vector.load %arg6[%c0_15, %c0_16, %c0_17] : memref<1x8x256xf32, #tpu.memory_space<vmem>>, vector<1x8x256xf32>
    %34 = vector.shape_cast %33 : vector<1x8x256xf32> to vector<8x256xf32>
    %35 = vector.shape_cast %32 : vector<8x256xf32> to vector<1x8x256xf32>
    tpu.vector_store %arg6[%c0_15, %c0_16, %c0_17], %35 {strides = array<i32>} : memref<1x8x256xf32, #tpu.memory_space<vmem>>, vector<1x8x256xf32>,
    return
  }
  func.func @transform_0(%arg0: i32) -> (i32, i32, i32) {
    %c0_i32 = arith.constant 0 : i32
    %c0_i32_0 = arith.constant 0 : i32
    %c0_i32_1 = arith.constant 0 : i32
    return %arg0, %c0_i32, %c0_i32_0 : i32, i32, i32
  }
  func.func @transform_1(%arg0: i32) -> (i32, i32) {
    %c0_i32 = arith.constant 0 : i32
    %c0_i32_0 = arith.constant 0 : i32
    %c0_i32_1 = arith.constant 0 : i32
    return %c0_i32, %c0_i32_0 : i32, i32
  }
  func.func @transform_2(%arg0: i32) -> (i32, i32) {
    %c0_i32 = arith.constant 0 : i32
    %c0_i32_0 = arith.constant 0 : i32
    %c0_i32_1 = arith.constant 0 : i32
    return %c0_i32, %c0_i32_0 : i32, i32
  }
  func.func @transform_3(%arg0: i32) -> (i32, i32) {
    %c0_i32 = arith.constant 0 : i32
    %c0_i32_0 = arith.constant 0 : i32
    %c0_i32_1 = arith.constant 0 : i32
    return %c0_i32, %c0_i32_0 : i32, i32
  }
  func.func @transform_4(%arg0: i32) -> (i32, i32) {
    %c0_i32 = arith.constant 0 : i32
    %c0_i32_0 = arith.constant 0 : i32
    %c0_i32_1 = arith.constant 0 : i32
    return %c0_i32, %c0_i32_0 : i32, i32
  }
  func.func @transform_5(%arg0: i32) -> (i32, i32, i32) {
    %c0_i32 = arith.constant 0 : i32
    %c0_i32_0 = arith.constant 0 : i32
    %c0_i32_1 = arith.constant 0 : i32
    return %arg0, %c0_i32, %c0_i32_0 : i32, i32, i32
  }
}

</mosaic_0001>

<llo_original>
// kernel: tpu_custom_call.1
$region0: #{tpu_custom_call.1}
  #allocation0 [shape = 'u32[]', space=smem, size = 0x4, offset = 0x4, fixed_abs, tag = 'smem constant byte address 0x4 - core index']
  #allocation1 [shape = 'u32[72,128]{1,0:T(1,128)}', space=vmem, size = 0x9000, scoped, tag = 'internal scratch']
  %s0 = inlined_call_operand.hbm [shape: f32[2,8,256], index: 0, kind: input, shape index: {}]
  %s1 = inlined_call_operand.vmem [shape: f32[8,2], index: 1, kind: input, shape index: {}]
  %s2 = inlined_call_operand.vmem [shape: f32[1,2], index: 2, kind: input, shape index: {}]
  %s3 = inlined_call_operand.vmem [shape: f32[8,2], index: 3, kind: input, shape index: {}]
  %s4 = inlined_call_operand.vmem [shape: f32[8,1], index: 4, kind: input, shape index: {}]
  %s5 = inlined_call_operand.hbm [shape: f32[2,8,256], index: 5, kind: output, shape index: {}]
  %s6 = sld [smem:[#allocation0]]
  $region57: #{tpu_custom_call.1} parent=0
    _
  %s8 = ssub.s32 1, %s6
  %s9 = scalar_select 0, %s8, %s6
  $region1: #{tpu_custom_call.1} parent=0
    #allocation2 [shape = 'u8[16384]{0}', space=vmem, size = 0x4000, scoped, tag = 'input window, operand 0']
    #allocation3 [shape = 's32[2]{0}', space=sflag, size = 0x8, scoped, tag = 'scoped memory for tpu_custom_call.1']
    #allocation4 [shape = 's32[2]{0}', space=sflag, size = 0x8, scoped, tag = 'scoped memory for tpu_custom_call.1']
    #allocation5 [shape = 'u8[16384]{0}', space=vmem, size = 0x4000, scoped, tag = 'output window, operand 0']
    %10 = vsyncpa [#allocation3], 0
    %s11 = scalar_lea.sflag [#allocation3], 1
    %12 = vsyncpa %s11, 0
    %13 = vsyncpa [#allocation4], 0
    %s14 = scalar_lea.sflag [#allocation4], 1
    %15 = vsyncpa %s14, 0
    loop: start=0, step=1, limit=4
    $region2: #{tpu_custom_call.1} parent=1 // loop_pre_header
      _
    $region3: #{tpu_custom_call.1} parent=1 // loop_header
      %s17 = sphi 0, %s21
      %p18 = scmp.ge.s32.totalorder %s17, 4
      %s27 = sphi 0, %s29
      %s30 = sphi 0, %s27
      %s31 = sphi 0, %s30
      %s47 = sphi 0, %s31
      %s51 = sphi 0, %s51
      %s53 = sphi 0, %s51
      %s54 = sphi 0, %s53
      %s68 = sphi 0, %s54
      %s72 = sphi 0, %s72
      %s74 = sphi 0, %s72
      %s75 = sphi 0, %s74
      %s89 = sphi 0, %s75
      %s93 = sphi 0, %s93
      %s95 = sphi 0, %s93
      %s96 = sphi 0, %s95
      %s110 = sphi 0, %s96
      %s114 = sphi 0, %s114
      %s116 = sphi 0, %s114
      %s117 = sphi 0, %s116
      %s131 = sphi 0, %s117
      %s137 = sphi 0, %s139
      %s140 = sphi 0, %s137
      %s141 = sphi 0, %s140
      %s157 = sphi 0, %s141
    $region4: #{tpu_custom_call.1} parent=1 // loop_header_branch
      %20 = sbr.rel (%p18) target = $region8
    $region5: #{tpu_custom_call.1} parent=1 // loop_body
      %s22 = ssub.s32 %s17, 1
      %s23 = ssub.s32 %s17, 2
      %s24 = sadd.s32 %s17, 1
      %s25 = ssub.s32 %s17, %s24
      %p26 = scmp.eq.s32.totalorder %s25, 0
      %s28 = sadd.s32 %s27, 1
      %s29 = scalar_select %p26, %s27, %s28
      %p32 = pneg %p26
      %p33 = scmp.eq.s32.totalorder %s17, 1
      %p34 = por %p32, %p33
      %p35 = scmp.ne.s32.totalorder %s27, %s30
      %p36 = scmp.eq.s32.totalorder %s17, 0
      %p37 = por %p35, %p36
      %p38 = scmp.ne.s32.totalorder %s27, %s30
      %p39 = scmp.eq.s32.totalorder %s22, 1
      %p40 = por %p38, %p39
      %p41 = scmp.ne.s32.totalorder %s30, %s31
      %p42 = scmp.eq.s32.totalorder %s22, 0
      %p43 = por %p41, %p42
      %p44 = scmp.ne.s32.totalorder %s30, %s31
      %p45 = scmp.eq.s32.totalorder %s23, 1
      %p46 = por %p44, %p45
      %p48 = scmp.ne.s32.totalorder %s31, %s47
      %p49 = scmp.eq.s32.totalorder %s23, 0
      %p50 = por %p48, %p49
      %s52 = sadd.s32 %s51, 1
      %p55 = scmp.eq.s32.totalorder %s17, 1
      %p56 = scmp.ne.s32.totalorder %s51, %s53
      %p57 = scmp.eq.s32.totalorder %s17, 0
      %p58 = por %p56, %p57
      %p59 = scmp.ne.s32.totalorder %s51, %s53
      %p60 = scmp.eq.s32.totalorder %s22, 1
      %p61 = por %p59, %p60
      %p62 = scmp.ne.s32.totalorder %s53, %s54
      %p63 = scmp.eq.s32.totalorder %s22, 0
      %p64 = por %p62, %p63
      %p65 = scmp.ne.s32.totalorder %s53, %s54
      %p66 = scmp.eq.s32.totalorder %s23, 1
      %p67 = por %p65, %p66
      %p69 = scmp.ne.s32.totalorder %s54, %s68
      %p70 = scmp.eq.s32.totalorder %s23, 0
      %p71 = por %p69, %p70
      %s73 = sadd.s32 %s72, 1
      %p76 = scmp.eq.s32.totalorder %s17, 1
      %p77 = scmp.ne.s32.totalorder %s72, %s74
      %p78 = scmp.eq.s32.totalorder %s17, 0
      %p79 = por %p77, %p78
      %p80 = scmp.ne.s32.totalorder %s72, %s74
      %p81 = scmp.eq.s32.totalorder %s22, 1
      %p82 = por %p80, %p81
      %p83 = scmp.ne.s32.totalorder %s74, %s75
      %p84 = scmp.eq.s32.totalorder %s22, 0
      %p85 = por %p83, %p84
      %p86 = scmp.ne.s32.totalorder %s74, %s75
      %p87 = scmp.eq.s32.totalorder %s23, 1
      %p88 = por %p86, %p87
      %p90 = scmp.ne.s32.totalorder %s75, %s89
      %p91 = scmp.eq.s32.totalorder %s23, 0
      %p92 = por %p90, %p91
      %s94 = sadd.s32 %s93, 1
      %p97 = scmp.eq.s32.totalorder %s17, 1
      %p98 = scmp.ne.s32.totalorder %s93, %s95
      %p99 = scmp.eq.s32.totalorder %s17, 0
      %p100 = por %p98, %p99
      %p101 = scmp.ne.s32.totalorder %s93, %s95
      %p102 = scmp.eq.s32.totalorder %s22, 1
      %p103 = por %p101, %p102
      %p104 = scmp.ne.s32.totalorder %s95, %s96
      %p105 = scmp.eq.s32.totalorder %s22, 0
      %p106 = por %p104, %p105
      %p107 = scmp.ne.s32.totalorder %s95, %s96
      %p108 = scmp.eq.s32.totalorder %s23, 1
      %p109 = por %p107, %p108
      %p111 = scmp.ne.s32.totalorder %s96, %s110
      %p112 = scmp.eq.s32.totalorder %s23, 0
      %p113 = por %p111, %p112
      %s115 = sadd.s32 %s114, 1
      %p118 = scmp.eq.s32.totalorder %s17, 1
      %p119 = scmp.ne.s32.totalorder %s114, %s116
      %p120 = scmp.eq.s32.totalorder %s17, 0
      %p121 = por %p119, %p120
      %p122 = scmp.ne.s32.totalorder %s114, %s116
      %p123 = scmp.eq.s32.totalorder %s22, 1
      %p124 = por %p122, %p123
      %p125 = scmp.ne.s32.totalorder %s116, %s117
      %p126 = scmp.eq.s32.totalorder %s22, 0
      %p127 = por %p125, %p126
      %p128 = scmp.ne.s32.totalorder %s116, %s117
      %p129 = scmp.eq.s32.totalorder %s23, 1
      %p130 = por %p128, %p129
      %p132 = scmp.ne.s32.totalorder %s117, %s131
      %p133 = scmp.eq.s32.totalorder %s23, 0
      %p134 = por %p132, %p133
      %s135 = ssub.s32 %s17, %s24
      %p136 = scmp.eq.s32.totalorder %s135, 0
      %s138 = sadd.s32 %s137, 1
      %s139 = scalar_select %p136, %s137, %s138
      %p142 = pneg %p136
      %p143 = scmp.eq.s32.totalorder %s17, 1
      %p144 = por %p142, %p143
      %p145 = scmp.ne.s32.totalorder %s137, %s140
      %p146 = scmp.eq.s32.totalorder %s17, 0
      %p147 = por %p145, %p146
      %p148 = scmp.ne.s32.totalorder %s137, %s140
      %p149 = scmp.eq.s32.totalorder %s22, 1
      %p150 = por %p148, %p149
      %p151 = scmp.ne.s32.totalorder %s140, %s141
      %p152 = scmp.eq.s32.totalorder %s22, 0
      %p153 = por %p151, %p152
      %p154 = scmp.ne.s32.totalorder %s140, %s141
      %p155 = scmp.eq.s32.totalorder %s23, 1
      %p156 = por %p154, %p155
      %p158 = scmp.ne.s32.totalorder %s141, %s157
      %p159 = scmp.eq.s32.totalorder %s23, 0
      %p160 = por %p158, %p159
      %p161 = scmp.le.s32.totalorder 1, %s17
      %p162 = scmp.lt.s32.totalorder %s17, 3
      %p163 = pnand %p161, %p162
      %p164 = pneg %p163
      // Predicated region
      $region9: #{tpu_custom_call.1} parent=5 // pred_check
        _
      $region10: #{tpu_custom_call.1} parent=5 // pred_check_branch
        %166 = sbr.rel (%p163) target = $region12
      $region11: #{tpu_custom_call.1} parent=5 // pred_region
        %s167 = ssub.s32 %s17, 1
        // Predicated region
        $region13: #{tpu_custom_call.1} parent=11 // pred_check
          %p168 = pneg %p64
        $region14: #{tpu_custom_call.1} parent=11 // pred_check_branch
          %170 = sbr.rel (%p168) target = $region16
        $region15: #{tpu_custom_call.1} parent=11 // pred_region
          _
        $region16: #{tpu_custom_call.1} parent=11 // pred_fallthru
          _
        // Predicated region
        $region17: #{tpu_custom_call.1} parent=11 // pred_check
          %p171 = pneg %p85
        $region18: #{tpu_custom_call.1} parent=11 // pred_check_branch
          %173 = sbr.rel (%p171) target = $region20
        $region19: #{tpu_custom_call.1} parent=11 // pred_region
          _
        $region20: #{tpu_custom_call.1} parent=11 // pred_fallthru
          _
        // Predicated region
        $region21: #{tpu_custom_call.1} parent=11 // pred_check
          %p174 = pneg %p106
        $region22: #{tpu_custom_call.1} parent=11 // pred_check_branch
          %176 = sbr.rel (%p174) target = $region24
        $region23: #{tpu_custom_call.1} parent=11 // pred_region
          _
        $region24: #{tpu_custom_call.1} parent=11 // pred_fallthru
          _
        // Predicated region
        $region25: #{tpu_custom_call.1} parent=11 // pred_check
          %p177 = pneg %p127
        $region26: #{tpu_custom_call.1} parent=11 // pred_check_branch
          %179 = sbr.rel (%p177) target = $region28
        $region27: #{tpu_custom_call.1} parent=11 // pred_region
          _
        $region28: #{tpu_custom_call.1} parent=11 // pred_fallthru
          _
      $region12: #{tpu_custom_call.1} parent=5 // pred_fallthru
        _
      %p180 = scmp.lt.s32.totalorder %s17, 2
      // Predicated region
      $region29: #{tpu_custom_call.1} parent=5 // pred_check
        %p181 = pneg %p180
      $region30: #{tpu_custom_call.1} parent=5 // pred_check_branch
        %183 = sbr.rel (%p181) target = $region32
      $region31: #{tpu_custom_call.1} parent=5 // pred_region
        // Predicated region
        $region33: #{tpu_custom_call.1} parent=31 // pred_check
          %p184 = pneg %p37
        $region34: #{tpu_custom_call.1} parent=31 // pred_check_branch
          %186 = sbr.rel (%p184) target = $region36
        $region35: #{tpu_custom_call.1} parent=31 // pred_region
          %s187 = sand.u32 %s27, 1
          %s188 = scalar_lea.sflag [#allocation3], %s187
          %s189 = sand.u32 %s27, 1
          %s190 = smul.addr %s189, 16
          %s191 = scalar_lea.vmem [#allocation2], %s190
          %193 = vsyncadd %s188, 0
          %s194 = smul.addr %s17, 2
          %s195 = smul.addr %s194, 8
          %s196 = scalar_lea.hbm %s0, %s195
          %s198 = sshll.u32 %s196, 4
          %s199 = int_to_ptr.hbm [resolvable:$true] %s198
          %s200 = sshll.u32 %s191, 4
          %s201 = int_to_ptr.vmem [resolvable:$true] %s200
          %203 = dma.hbm_to_vmem [thread:$0]  %s199, 256, %s201, %s188
        $region36: #{tpu_custom_call.1} parent=31 // pred_fallthru
          _
      $region32: #{tpu_custom_call.1} parent=5 // pred_fallthru
        _
      %p204 = scmp.le.s32.totalorder 1, %s17
      %p205 = scmp.lt.s32.totalorder %s17, 3
      %p206 = pnand %p204, %p205
      %p207 = pneg %p206
      // Predicated region
      $region37: #{tpu_custom_call.1} parent=5 // pred_check
        _
      $region38: #{tpu_custom_call.1} parent=5 // pred_check_branch
        %209 = sbr.rel (%p206) target = $region40
      $region39: #{tpu_custom_call.1} parent=5 // pred_region
        %s210 = ssub.s32 %s17, 1
        %s211 = sand.u32 %s30, 1
        %s212 = scalar_lea.sflag [#allocation3], %s211
        %s213 = sand.u32 %s30, 1
        %s214 = smul.addr %s213, 16
        %s215 = scalar_lea.vmem [#allocation2], %s214
        // Predicated region
        $region41: #{tpu_custom_call.1} parent=39 // pred_check
          %p216 = pneg %p43
        $region42: #{tpu_custom_call.1} parent=39 // pred_check_branch
          %218 = sbr.rel (%p216) target = $region44
        $region43: #{tpu_custom_call.1} parent=39 // pred_region
          %220 = dma.done %s212, 256
        $region44: #{tpu_custom_call.1} parent=39 // pred_fallthru
          _
        %s221 = sand.u32 %s30, 1
        %s222 = scalar_lea.sflag [#allocation3], %s221
        %s223 = sand.u32 %s30, 1
        %s224 = smul.addr %s223, 16
        %s225 = scalar_lea.vmem [#allocation2], %s224
        %p226 = pneg %p43
        %p227 = pneg %p40
        %p228 = pneg %p64
        %p229 = pneg %p61
        %p230 = pneg %p85
        %p231 = pneg %p82
        %p232 = pneg %p106
        %p233 = pneg %p103
        %p234 = pneg %p127
        %p235 = pneg %p124
        %p236 = pneg %p153
        %p237 = pneg %p150
        %s238 = sand.u32 %s140, 1
        %s239 = scalar_lea.sflag [#allocation4], %s238
        %s240 = sand.u32 %s140, 1
        %s241 = smul.addr %s240, 16
        %s242 = scalar_lea.vmem [#allocation5], %s241
        %v243 = vld [vmem:[%s215] sm:$0xff]
        %v244 = vld [vmem:[%s215 + $0x8] sm:$0xff]
        %v245 = vadd.f32 %v243, %v244
        %246 = vadd.xlane.f32.xlu0 %v245
        %v247 = vpop.xlane.xlu0 %246
        %v248 = vrcp.pop 256.0
        %v249 = vmul.f32 256.0, %v248
        %v250 = vsub.f32 1.0, %v249
        %v251 = vmul.f32 %v248, %v250
        %v252 = vadd.f32 %v248, %v251
        %vm253 = vweird.f32 %v248
        %v254 = vsel %vm253, %v248, %v252
        %v255 = vmul.f32 %v247, %v254
        %v256 = vld [vmem:[%s1] sm:$0xff]
        %v257 = vmul.f32 %v256, %v255
        %vm258 = vcmask 15360
        %v259 = vsel %vm258, %v257, 0.0
        %v260 = vrot.slane %v259, 4
        %v261 = vadd.f32 %v259, %v260
        %v262 = vrot.slane %v261, 2
        %v263 = vadd.f32 %v261, %v262
        %v264 = vrot.slane %v263, 1
        %v265 = vadd.f32 %v263, %v264
        %v266 = vld [vmem:[%s2] sm:$0x1]
        %v267 = vadd.f32 %v265, %v266
        %v268 = vxor.u32 %v267, 2147483648
        %v269 = vmul.f32 %v268, 1.442695
        %v270 = vpow.pop %v269
        %v271 = vadd.f32 %v270, 1.0
        %v272 = vrcp.pop %v271
        %v273 = vmul.f32 %v271, %v272
        %v274 = vsub.f32 1.0, %v273
        %v275 = vmul.f32 %v272, %v274
        %v276 = vadd.f32 %v272, %v275
        %vm277 = vweird.f32 %v271
        %vm278 = vweird.f32 %v272
        %vm279 = vmor %vm277, %vm278
        %v280 = vsel %vm279, %v272, %v276
        %v281 = vand.u32 2147483647, %v271
        %vm282 = vcmp.eq.f32.partialorder %v281, 8.507059e+37
        %v283 = vand.u32 %v271, 2147483648
        %v284 = vor.u32 1.1754944e-38, %v283
        %v285 = vsel %vm282, %v284, %v280
        %v286 = vmul.f32 1.0, %v285
        %v287 = vmul.f32 %v267, %v286
        %v288 = vld [vmem:[%s3] sm:$0xff]
        %v289 = vperm.slane %v287, 0
        %v290 = vmul.f32 %v288, %v289
        %v291 = vsel %vm258, %v290, 0.0
        %292 = vadd.xlane.f32.xlu0 %v291
        %v293 = vpop.xlane.xlu0 %292
        %v294 = vld [vmem:[%s4] sm:$0xff]
        %v295 = vadd.f32 %v293, %v294
        %v296 = vxor.u32 %v295, 2147483648
        %v297 = vmul.f32 %v296, 1.442695
        %v298 = vpow.pop %v297
        %v299 = vadd.f32 %v298, 1.0
        %v300 = vrcp.pop %v299
        %v301 = vmul.f32 %v299, %v300
        %v302 = vsub.f32 1.0, %v301
        %v303 = vmul.f32 %v300, %v302
        %v304 = vadd.f32 %v300, %v303
        %vm305 = vweird.f32 %v299
        %vm306 = vweird.f32 %v300
        %vm307 = vmor %vm305, %vm306
        %v308 = vsel %vm307, %v300, %v304
        %v309 = vand.u32 2147483647, %v299
        %vm310 = vcmp.eq.f32.partialorder %v309, 8.507059e+37
        %v311 = vand.u32 %v299, 2147483648
        %v312 = vor.u32 1.1754944e-38, %v311
        %v313 = vsel %vm310, %v312, %v308
        %v314 = vmul.f32 1.0, %v313
        %316 = vset.pattern.permute.xlu0 0
        %317 = vperm.xlu0 %316, %v314
        %v318 = vpop.permute.xlu0 %317
        %v320 = vmul.f32 %v243, %v318
        %v321 = vmul.f32 %v244, %v318
        %322 = vst [vmem:[%s242] sm:$0xff] %v320
        %323 = vst [vmem:[%s242 + $0x8] sm:$0xff] %v321
        %s324 = sand.u32 %s140, 1
        %s325 = scalar_lea.sflag [#allocation4], %s324
        %s326 = sand.u32 %s140, 1
        %s327 = smul.addr %s326, 16
        %s328 = scalar_lea.vmem [#allocation5], %s327
        // Predicated region
        $region45: #{tpu_custom_call.1} parent=39 // pred_check
          %p329 = pneg %p150
        $region46: #{tpu_custom_call.1} parent=39 // pred_check_branch
          %331 = sbr.rel (%p329) target = $region48
        $region47: #{tpu_custom_call.1} parent=39 // pred_region
          %333 = vsyncadd %s325, 0
          %s334 = smul.addr %s22, 2
          %s335 = smul.addr %s334, 8
          %s336 = scalar_lea.hbm %s5, %s335
          %s338 = sshll.u32 %s328, 4
          %s339 = int_to_ptr.vmem [resolvable:$true] %s338
          %s340 = sshll.u32 %s336, 4
          %s341 = int_to_ptr.hbm [resolvable:$true] %s340
          %343 = dma.vmem_to_hbm [thread:$0]  %s339, 256, %s341, %s325
        $region48: #{tpu_custom_call.1} parent=39 // pred_fallthru
          _
      $region40: #{tpu_custom_call.1} parent=5 // pred_fallthru
        _
      %p344 = scmp.le.s32.totalorder 2, %s17
      // Predicated region
      $region49: #{tpu_custom_call.1} parent=5 // pred_check
        %p345 = pneg %p344
      $region50: #{tpu_custom_call.1} parent=5 // pred_check_branch
        %347 = sbr.rel (%p345) target = $region52
      $region51: #{tpu_custom_call.1} parent=5 // pred_region
        %s348 = ssub.s32 %s17, 2
        // Predicated region
        $region53: #{tpu_custom_call.1} parent=51 // pred_check
          %p349 = pneg %p156
        $region54: #{tpu_custom_call.1} parent=51 // pred_check_branch
          %351 = sbr.rel (%p349) target = $region56
        $region55: #{tpu_custom_call.1} parent=51 // pred_region
          %s352 = sand.u32 %s141, 1
          %s353 = scalar_lea.sflag [#allocation4], %s352
          %s354 = sand.u32 %s141, 1
          %s355 = smul.addr %s354, 16
          %s356 = scalar_lea.vmem [#allocation5], %s355
          %358 = dma.done %s353, 256
        $region56: #{tpu_custom_call.1} parent=51 // pred_fallthru
          _
      $region52: #{tpu_custom_call.1} parent=5 // pred_fallthru
        _
    $region6: #{tpu_custom_call.1} parent=1 // loop_footer
      %s21 = sadd.s32 1, %s17
    $region7: #{tpu_custom_call.1} parent=1 // loop_footer_branch
      %16 = sbr.rel target = $region3
    $region8: #{tpu_custom_call.1} parent=1 // loop_exit
      _
    %359 = vsyncpa [#allocation3], 1
    %s360 = scalar_lea.sflag [#allocation3], 1
    %361 = vsyncpa %s360, 1
    %362 = vsyncpa [#allocation4], 1
    %s363 = scalar_lea.sflag [#allocation4], 1
    %364 = vsyncpa %s363, 1

</llo_original>
